<compile_context>
chip_gen: v7x
topology: tpu7x:2x2x1
jax: 0.10.0
libtpu: 0.0.40
codegen_flags: <defaults>
</compile_context>

<pallas_src>
import functools

import jax
import jax.numpy as jnp
import numpy as np
from jax.experimental import pallas as pl
from jax.experimental.pallas import tpu as pltpu

_LANE = 128
_MAX_LANE_TILE = 2048          # lanes (columns) processed per grid step


def _learnable_filter_kernel(m_ref, x_ref, o_ref, *, precision):
    # m_ref: (H, H) fused filter matrix; x_ref / o_ref: (H, TL) lane-dense tiles.
    # One MXU matmul per grid step, f32 accumulation, unmasked lane-dense store.
    o_ref[...] = jnp.dot(
        m_ref[...], x_ref[...],
        preferred_element_type=jnp.float32,
        precision=precision,
    ).astype(o_ref.dtype)


@functools.lru_cache(maxsize=None)
def _dft_bases(h):
    # Cached cos/sin DFT bases (host-side, float64). Angles use (k*h) mod H in
    # exact integer arithmetic so large H does not lose precision in k*h.
    k = np.arange(h, dtype=np.int64)
    ang = (2.0 * np.pi / h) * ((k[:, None] * k[None, :]) % h).astype(np.float64)
    return np.cos(ang), np.sin(ang)       # symmetric


def _fused_filter_matrix(filt, h):
    # M = (1/H) * (C diag(f) C + S diag(f) S); C, S symmetric.
    cos_np, sin_np = _dft_bases(h)
    c = jnp.asarray(cos_np, dtype=jnp.float32)
    s = jnp.asarray(sin_np, dtype=jnp.float32)
    f = filt.astype(jnp.float32)          # (H, 1): f * C == diag(f) @ C
    hi = jax.lax.Precision.HIGHEST        # keep the small O(H^3) setup accurate
    m = jnp.dot(c, f * c, precision=hi) + jnp.dot(s, f * s, precision=hi)
    return m * (1.0 / h)


def _pick_lane_tile(cols_padded):
    # cols_padded is a multiple of 128. Pick the largest tile <= _MAX_LANE_TILE
    # while keeping >= 2 grid steps when possible (megacore / v7x's 2 TCs).
    if cols_padded <= _LANE:
        return cols_padded
    tl = min(_MAX_LANE_TILE, cols_padded // 2)
    return max(_LANE, (tl // _LANE) * _LANE)


def learnable_filter_forward(x, filt, *, compute_dtype=jnp.bfloat16):
    """x: (N, C, H, W), filt: (H, 1). Returns (N, C, H, W) float32."""
    N, Cc, H, W = x.shape
    assert filt.shape == (H, 1)

    # Fused (H, H) matrix = inverse-DFT * diag(filter) * forward-DFT.
    m = _fused_filter_matrix(filt, H).astype(compute_dtype)

    # Lane-dense layout: (N, C, H, W) -> (H, N*C*W); pad columns to the lane tile.
    cols = N * Cc * W
    xh = jnp.moveaxis(x, 2, 0).reshape(H, cols).astype(compute_dtype)
    cols_p = pl.cdiv(cols, _LANE) * _LANE
    tl = _pick_lane_tile(cols_p)
    cols_p = pl.cdiv(cols_p, tl) * tl
    if cols_p != cols:
        xh = jnp.pad(xh, ((0, 0), (0, cols_p - cols)))

    precision = (jax.lax.Precision.HIGHEST
                 if compute_dtype == jnp.float32 else None)
    kernel = functools.partial(_learnable_filter_kernel, precision=precision)

    out = pl.pallas_call(
        kernel,
        out_shape=jax.ShapeDtypeStruct((H, cols_p), jnp.float32),
        grid_spec=pltpu.PrefetchScalarGridSpec(
            num_scalar_prefetch=0,
            grid=(cols_p // tl,),
            in_specs=[
                # Fused filter matrix: constant block index -> fetched once.
                # (For very large H it could additionally be single-buffered.)
                pl.BlockSpec((H, H), lambda j: (0, 0)),
                # Lane-dense input tile.
                pl.BlockSpec((H, tl), lambda j: (0, j)),
            ],
            out_specs=pl.BlockSpec((H, tl), lambda j: (0, j)),
        ),
        compiler_params=pltpu.CompilerParams(
            dimension_semantics=("parallel",),
            vmem_limit_bytes=64 * 1024 * 1024,
        ),
    )(m, xh)

    # Undo padding and layout plumbing: (H, N*C*W) -> (N, C, H, W).
    y = out[:, :cols].reshape(H, N, Cc, W)
    return jnp.moveaxis(y, 0, 2)


def init_filter(filter_size):
    # nn.Parameter(2 * fftfreq(filter_size).abs().view(-1, 1)), deterministically.
    freq = np.fft.fftfreq(filter_size)
    return jnp.asarray(2.0 * np.abs(freq), dtype=jnp.float32).reshape(filter_size, 1)


if __name__ == "__main__":
    key = jax.random.PRNGKey(0)
    N, C, H, W = 2, 4, 16, 16          # filter_size = H = 16
    x = jax.random.normal(key, (N, C, H, W), dtype=jnp.float32)
    filt = init_filter(H)

    # Float64 host reference with the module's FFT semantics.
    x_np = np.asarray(x, dtype=np.float64)
    f_np = np.asarray(filt, dtype=np.float64)[None, None, :, :]
    ref = np.real(np.fft.ifft(np.fft.fft(x_np, axis=2) * f_np, axis=2))

    # Performance path: bf16 MXU operands (native on v6e/v7x), f32 accumulation.
    y = learnable_filter_forward(x, filt)
    jax.block_until_ready(y)
    np.testing.assert_allclose(np.asarray(y), ref, atol=3e-2, rtol=3e-2)

    # Full-precision path: matches the PyTorch float32 forward tightly.
    y32 = learnable_filter_forward(x, filt, compute_dtype=jnp.float32)
    jax.block_until_ready(y32)
    np.testing.assert_allclose(np.asarray(y32), ref, atol=1e-4, rtol=1e-4)

    print("KERNEL_OK")
</pallas_src>

<mosaic_0001>
module attributes {stable_mosaic.version = 11 : i64} {
  func.func @_learnable_filter_kernel(%arg0: i32, %arg1: memref<16x16xbf16, #tpu.memory_space<vmem>>, %arg2: memref<16x128xbf16, #tpu.memory_space<vmem>>, %arg3: memref<16x128xf32, #tpu.memory_space<vmem>>) attributes {dimension_semantics = [#tpu.dimension_semantics<parallel>], iteration_bounds = array<i64: 1>, scalar_prefetch = 0 : i64, scratch_operands = 0 : i64, tpu.core_type = #tpu.core_type<tc>, window_params = [{pipeline_mode = #tpu.pipeline_mode<synchronous>, transform_indices = @transform_0, window_bounds = array<i64: 16, 16>}, {transform_indices = @transform_1, window_bounds = array<i64: 16, 128>}, {transform_indices = @transform_2, window_bounds = array<i64: 16, 128>}]} {
    %c0 = arith.constant 0 : index
    %c0_0 = arith.constant 0 : index
    %0 = vector.load %arg1[%c0, %c0_0] : memref<16x16xbf16, #tpu.memory_space<vmem>>, vector<16x16xbf16>
    %c0_1 = arith.constant 0 : index
    %c0_2 = arith.constant 0 : index
    %1 = vector.load %arg2[%c0_1, %c0_2] : memref<16x128xbf16, #tpu.memory_space<vmem>>, vector<16x128xbf16>
    %cst = arith.constant dense<0.000000e+00> : vector<16x128xf32>
    %2 = tpu.matmul %0, %1, %cst {dimension_numbers = #tpu.dot_dimension_numbers<[1], [0], [0], [1], [0, 0, 1, 1], [], []>} : vector<16x16xbf16>, vector<16x128xbf16>, vector<16x128xf32> -> vector<16x128xf32>
    %c0_3 = arith.constant 0 : index
    %c0_4 = arith.constant 0 : index
    %3 = vector.load %arg3[%c0_3, %c0_4] : memref<16x128xf32, #tpu.memory_space<vmem>>, vector<16x128xf32>
    tpu.vector_store %arg3[%c0_3, %c0_4], %2 {strides = array<i32>} : memref<16x128xf32, #tpu.memory_space<vmem>>, vector<16x128xf32>,
    return
  }
  func.func @transform_0(%arg0: i32) -> (i32, i32) {
    %c0_i32 = arith.constant 0 : i32
    %c0_i32_0 = arith.constant 0 : i32
    %c0_i32_1 = arith.constant 0 : i32
    return %c0_i32, %c0_i32_0 : i32, i32
  }
  func.func @transform_1(%arg0: i32) -> (i32, i32) {
    %c0_i32 = arith.constant 0 : i32
    %c0_i32_0 = arith.constant 0 : i32
    return %c0_i32, %arg0 : i32, i32
  }
  func.func @transform_2(%arg0: i32) -> (i32, i32) {
    %c0_i32 = arith.constant 0 : i32
    %c0_i32_0 = arith.constant 0 : i32
    return %c0_i32, %arg0 : i32, i32
  }
}

</mosaic_0001>

<llo_original>
// kernel: tpu_custom_call.1
$region0: #{tpu_custom_call.1}
  #allocation0 [shape = 'u32[]', space=smem, size = 0x4, offset = 0x4, fixed_abs, tag = 'smem constant byte address 0x4 - core index']
  #allocation1 [shape = 'u32[144,128]{1,0:T(1,128)}', space=vmem, size = 0x12000, scoped, tag = 'internal scratch']
  %s0 = inlined_call_operand.hbm [shape: bf16[16,16], index: 0, kind: input, shape index: {}]
  %s1 = inlined_call_operand.hbm [shape: bf16[16,128], index: 1, kind: input, shape index: {}]
  %s2 = inlined_call_operand.hbm [shape: f32[16,128], index: 2, kind: output, shape index: {}]
  %s3 = sld [smem:[#allocation0]]
  $region26: #{tpu_custom_call.1} parent=0
    _
  %s5 = ssub.s32 1, %s3
  %s6 = scalar_select 0, %s5, %s3
  $region1: #{tpu_custom_call.1} parent=0
    #allocation2 [shape = 'u8[4096]{0}', space=vmem, size = 0x1000, scoped, tag = 'input window, operand 0, single buffered']
    #allocation3 [shape = 's32[1]{0}', space=sflag, size = 0x4, scoped, tag = 'scoped memory for tpu_custom_call.1']
    #allocation4 [shape = 's32[1]{0}', space=sflag, size = 0x4, scoped, tag = 'scoped memory for tpu_custom_call.1']
    #allocation5 [shape = 'u8[4096]{0}', space=vmem, size = 0x1000, scoped, tag = 'input window, operand 1, single buffered']
    #allocation6 [shape = 's32[1]{0}', space=sflag, size = 0x4, scoped, tag = 'scoped memory for tpu_custom_call.1']
    #allocation7 [shape = 'u8[8192]{0}', space=vmem, size = 0x2000, scoped, tag = 'output window, operand 0, single buffered']
    %7 = vsyncpa [#allocation3], 0
    %8 = vsyncpa [#allocation6], 0
    %9 = vsyncpa [#allocation4], 0
    // Predicated region
    $region2: #{tpu_custom_call.1} parent=1 // pred_check
      _
    $region3: #{tpu_custom_call.1} parent=1 // pred_check_branch
      %11 = sbr.rel (0) target = $region5
    $region4: #{tpu_custom_call.1} parent=1 // pred_region
      %s13 = ssub.s32 128, 128
      %14 = vsyncadd [#allocation3], %s13
      %s15 = sshll.u32 [#allocation2], 4
      %s16 = int_to_ptr.vmem [resolvable:$true] %s15
      %21 = dma.hbm_to_vmem [thread:$0]  %s0, 128, %s16, [#allocation3], 64, 64, 4
    $region5: #{tpu_custom_call.1} parent=1 // pred_fallthru
      _
    // Predicated region
    $region6: #{tpu_custom_call.1} parent=1 // pred_check
      _
    $region7: #{tpu_custom_call.1} parent=1 // pred_check_branch
      %23 = sbr.rel (0) target = $region9
    $region8: #{tpu_custom_call.1} parent=1 // pred_region
      %s25 = ssub.s32 128, 128
      %26 = vsyncadd [#allocation6], %s25
      %s27 = sshll.u32 [#allocation5], 4
      %s28 = int_to_ptr.vmem [resolvable:$true] %s27
      %33 = dma.hbm_to_vmem [thread:$0]  %s1, 128, %s28, [#allocation6], 64, 64, 4
    $region9: #{tpu_custom_call.1} parent=1 // pred_fallthru
      _
    // Predicated region
    $region10: #{tpu_custom_call.1} parent=1 // pred_check
      _
    $region11: #{tpu_custom_call.1} parent=1 // pred_check_branch
      %35 = sbr.rel (0) target = $region13
    $region12: #{tpu_custom_call.1} parent=1 // pred_region
      %36 = dma.done [#allocation3], 128
    $region13: #{tpu_custom_call.1} parent=1 // pred_fallthru
      _
    // Predicated region
    $region14: #{tpu_custom_call.1} parent=1 // pred_check
      _
    $region15: #{tpu_custom_call.1} parent=1 // pred_check_branch
      %38 = sbr.rel (0) target = $region17
    $region16: #{tpu_custom_call.1} parent=1 // pred_region
      %39 = dma.done [#allocation6], 128
    $region17: #{tpu_custom_call.1} parent=1 // pred_fallthru
      _
    %v41 = vld [vmem:[#allocation2] sm:$0xf]
    %v42 = vld [vmem:[#allocation2 + $0x4] sm:$0xf]
    %v43 = vld [vmem:[#allocation5] sm:$0xf]
    %v44 = vld [vmem:[#allocation5 + $0x4] sm:$0xf]
    %v47 = vunpack.c.l.b16 %v41
    %v48 = vunpack.c.l.b16 %v42
    %v49 = vpack.c.b16 %v48, %v47
    %v52 = vunpack.c.l.b16 %v43
    %v53 = vunpack.c.l.b16 %v44
    %v54 = vpack.c.b16 %v53, %v52
    %vm56 = vcmask 130048
    %v58 = vsel %vm56, %v49, 0
    %60 = vmatprep.subr.bf16.mxu0 0
    %61 = vmatpush1.bf16.msra.mxu0 %v54
    %62 = vmatprep.subr.bf16.mxu0 0
    %63 = vmatpush1.bf16.msra.mxu0 0
    %64 = vmatprep.subr.bf16.mxu0 0
    %65 = vmatpush1.bf16.msra.mxu0 0
    %66 = vmatprep.subr.bf16.mxu0 0
    %67 = vmatpush1.bf16.msra.mxu0 0
    %68 = vmatprep.subr.bf16.mxu0 0
    %69 = vmatpush1.bf16.msra.mxu0 0
    %70 = vmatprep.subr.bf16.mxu0 0
    %71 = vmatpush1.bf16.msra.mxu0 0
    %72 = vmatprep.subr.bf16.mxu0 0
    %73 = vmatpush1.bf16.msra.mxu0 0
    %74 = vmatprep.subr.bf16.mxu0 0
    %75 = vmatpush1.bf16.msra.mxu0 0
    %76 = vmatprep.subr.bf16.mxu0 0
    %77 = vmatpush1.bf16.msra.mxu0 0
    %78 = vmatprep.subr.bf16.mxu0 0
    %79 = vmatpush1.bf16.msra.mxu0 0
    %80 = vmatprep.subr.bf16.mxu0 0
    %81 = vmatpush1.bf16.msra.mxu0 0
    %82 = vmatprep.subr.bf16.mxu0 0
    %83 = vmatpush1.bf16.msra.mxu0 0
    %84 = vmatprep.subr.bf16.mxu0 0
    %85 = vmatpush1.bf16.msra.mxu0 0
    %86 = vmatprep.subr.bf16.mxu0 0
    %87 = vmatpush1.bf16.msra.mxu0 0
    %88 = vmatprep.subr.bf16.mxu0 0
    %89 = vmatpush1.bf16.msra.mxu0 0
    %90 = vmatprep.subr.bf16.mxu0 0
    %91 = vmatpush1.bf16.msra.mxu0 0
    %92 = vmatprep.mubr.bf16.mxu0 0
    %93 = vmatmul.mubr.bf16.gmra.mrb[0].mxu0 %v58
    %v94 = vpop.f32.mrb[0].mxu0
    %v95 = vadd.f32 0.0, %v94
    %v96 = vpop.f32.mrb[0].mxu0
    %v97 = vpop.f32.mrb[0].mxu0
    %v98 = vadd.f32 0.0, %v97
    %v99 = vpop.f32.mrb[0].mxu0
    %100 = vdwg.mxu0
    %101 = vst [vmem:[#allocation7] sm:$0xff] %v95
    %102 = vst [vmem:[#allocation7 + $0x8] sm:$0xff] %v98
    // Predicated region
    $region18: #{tpu_custom_call.1} parent=1 // pred_check
      _
    $region19: #{tpu_custom_call.1} parent=1 // pred_check_branch
      %104 = sbr.rel (0) target = $region21
    $region20: #{tpu_custom_call.1} parent=1 // pred_region
      %s106 = ssub.s32 256, 256
      %107 = vsyncadd [#allocation4], %s106
      %s108 = sshll.u32 [#allocation7], 4
      %s109 = int_to_ptr.vmem [resolvable:$true] %s108
      %114 = dma.vmem_to_hbm [thread:$0]  %s109, 256, %s2, [#allocation4], 128, 128, 8
    $region21: #{tpu_custom_call.1} parent=1 // pred_fallthru
      _
    // Predicated region
    $region22: #{tpu_custom_call.1} parent=1 // pred_check
      _
    $region23: #{tpu_custom_call.1} parent=1 // pred_check_branch
      %116 = sbr.rel (0) target = $region25
    $region24: #{tpu_custom_call.1} parent=1 // pred_region
      %117 = dma.done [#allocation4], 256
    $region25: #{tpu_custom_call.1} parent=1 // pred_fallthru
      _
    %118 = vsyncpa [#allocation3], 1
    %119 = vsyncpa [#allocation6], 1
    %120 = vsyncpa [#allocation4], 1

</llo_original>
